<compile_context>
chip_gen: v5e
topology: v5e:2x2
jax: 0.10.0
libtpu: 0.0.40
codegen_flags: <defaults>
</compile_context>

<pallas_src>
import functools
import math

import jax
import jax.numpy as jnp
from jax.experimental import pallas as pl
from jax.experimental.pallas import tpu as pltpu


def _round_up(x, m):
    return ((x + m - 1) // m) * m


def _row_tile(m, target=256):
    """Row tile: 256 for large M; for small M use two tiles (v7x megacore balance)."""
    if m >= 2 * target:
        return target
    half = (m + 1) // 2
    return max(8, _round_up(half, 8))


def _col_chunk(m_pad):
    """Column chunk width for the in-kernel loop (must divide m_pad)."""
    if m_pad <= 2048:
        return m_pad                      # single full-width chunk
    for cand in (2048, 1024, 512, 256):   # m_pad is a multiple of 256 here
        if m_pad % cand == 0:
            return cand
    return m_pad


# ---------------------------------------------------------------------------
# Kernel 1: MLP head (Linear -> ReLU -> Linear) + L2 normalize, emits bf16
#           SupCon operands (rhs = normalized feats, lhs = normalized feats / T)
# ---------------------------------------------------------------------------
def _head_kernel(x_ref, w1_ref, b1_ref, w2_ref, b2_ref, rhs_ref, lhs_ref, *, inv_t):
    h = jnp.dot(x_ref[...], w1_ref[...], preferred_element_type=jnp.float32) + b1_ref[...]
    h = jnp.maximum(h, 0.0)
    f = jnp.dot(h.astype(jnp.bfloat16), w2_ref[...],
                preferred_element_type=jnp.float32) + b2_ref[...]
    # F.normalize: clamp squared norm with eps^2 to keep max(norm, 1e-12) semantics.
    inv_norm = jax.lax.rsqrt(jnp.maximum(jnp.sum(f * f, axis=1, keepdims=True), 1e-24))
    fn = f * inv_norm
    rhs_ref[...] = fn.astype(jnp.bfloat16)             # SupCon rhs
    lhs_ref[...] = (fn * inv_t).astype(jnp.bfloat16)   # SupCon lhs (1/T folded in)


def mlp_head_supcon_operands(x, w1, b1, w2, b2, *, inv_t, tm, m_pad):
    """Returns (lhs, rhs) bf16 arrays of shape (m_pad, feat_dim)."""
    m, dim_in = x.shape
    feat_dim = w2.shape[1]

    x = x.astype(jnp.bfloat16)
    if m_pad != m:
        x = jnp.pad(x, ((0, m_pad - m), (0, 0)))
    w1 = w1.astype(jnp.bfloat16)
    w2 = w2.astype(jnp.bfloat16)
    b1 = b1.reshape(1, dim_in).astype(jnp.float32)
    b2 = b2.reshape(1, feat_dim).astype(jnp.float32)

    kernel = functools.partial(_head_kernel, inv_t=float(inv_t))
    rhs, lhs = pl.pallas_call(
        kernel,
        out_shape=(jax.ShapeDtypeStruct((m_pad, feat_dim), jnp.bfloat16),
                   jax.ShapeDtypeStruct((m_pad, feat_dim), jnp.bfloat16)),
        grid_spec=pltpu.PrefetchScalarGridSpec(
            num_scalar_prefetch=0,
            grid=(m_pad // tm,),
            in_specs=[
                pl.BlockSpec((tm, dim_in), lambda i: (i, 0)),        # x row tile (bf16)
                pl.BlockSpec((dim_in, dim_in), lambda i: (0, 0)),    # W1 (resident)
                pl.BlockSpec((1, dim_in), lambda i: (0, 0)),         # b1
                pl.BlockSpec((dim_in, feat_dim), lambda i: (0, 0)),  # W2 (resident)
                pl.BlockSpec((1, feat_dim), lambda i: (0, 0)),       # b2
            ],
            out_specs=(pl.BlockSpec((tm, feat_dim), lambda i: (i, 0)),
                       pl.BlockSpec((tm, feat_dim), lambda i: (i, 0))),
        ),
        compiler_params=pltpu.CompilerParams(
            dimension_semantics=("parallel",),
            vmem_limit_bytes=32 * 1024 * 1024),
    )(x, w1, b1, w2, b2)
    return lhs, rhs


# ---------------------------------------------------------------------------
# Kernel 2: SupConLoss — 1-D row grid, VMEM-resident RHS, fixed-shift exp-sum
# ---------------------------------------------------------------------------
def _supcon_kernel(lhs_ref, rhs_ref, labr_ref, labc_ref, out_ref, *,
                   tm, cn, n_chunks, m_valid, m_pad, shift):
    i = pl.program_id(0)
    row0 = i * tm

    lhs = lhs_ref[...]                       # (tm, K) bf16, already scaled by 1/T
    lab_r = labr_ref[...]                    # (tm, 1) int32

    # Hoisted once per row tile (not per column chunk).
    col_l = jax.lax.broadcasted_iota(jnp.int32, (tm, cn), 1)
    diff = col_l - jax.lax.broadcasted_iota(jnp.int32, (tm, cn), 0)

    def chunk(c, carry):
        denom, ssum, cnt = carry
        col0 = c * cn
        if not isinstance(col0, int):
            col0 = pl.multiple_of(col0, cn)
        # Similarities against the VMEM-resident feature matrix (A @ B^T on MXU).
        sim = jax.lax.dot_general(
            lhs, rhs_ref[pl.ds(col0, cn), :],
            dimension_numbers=(((1,), (1,)), ((), ())),
            preferred_element_type=jnp.float32)               # (tm, cn) f32
        keep = diff != (row0 - col0)                          # off-diagonal
        if m_valid != m_pad:
            keep &= col_l < (m_valid - col0)                  # drop padded columns
        pos = keep & (lab_r == labc_ref[pl.ds(c, 1), :])      # same label, not self
        # Fixed-shift exp-sum: features are L2-normalized so sim <= shift = 1/T.
        p = jnp.where(keep, jnp.exp(sim - shift), 0.0)
        denom = denom + jnp.sum(p, axis=1, keepdims=True)
        ssum = ssum + jnp.sum(jnp.where(pos, sim, 0.0), axis=1, keepdims=True)
        cnt = cnt + jnp.sum(pos.astype(jnp.float32), axis=1, keepdims=True)
        return denom, ssum, cnt

    init = (jnp.zeros((tm, 1), jnp.float32),
            jnp.zeros((tm, 1), jnp.float32),
            jnp.zeros((tm, 1), jnp.float32))
    if n_chunks == 1:
        denom, ssum, cnt = chunk(0, init)
    else:
        denom, ssum, cnt = jax.lax.fori_loop(0, n_chunks, chunk, init)

    # sum_pos log_prob = sum_pos sim - count * logZ   (shift-invariant)
    log_z = shift + jnp.log(denom)
    # +1: label_mask row-sum in the reference includes the self pair.
    out_ref[...] = -(ssum - cnt * log_z) / (cnt + 1.0)


def supcon_loss_from_operands(lhs_pad, rhs_pad, labels, *, m_valid, temperature, tm):
    """lhs_pad/rhs_pad: (m_pad, K) bf16 (lhs pre-scaled by 1/T); labels: (m_valid,)."""
    m_pad, k = rhs_pad.shape
    cn = _col_chunk(m_pad)
    n_chunks = m_pad // cn

    labels = labels.astype(jnp.int32)
    if m_pad != m_valid:
        labels = jnp.pad(labels, (0, m_pad - m_valid), constant_values=-1)
    lab_row = labels.reshape(m_pad, 1)
    lab_col = labels.reshape(n_chunks, cn)

    kernel = functools.partial(
        _supcon_kernel, tm=tm, cn=cn, n_chunks=n_chunks,
        m_valid=m_valid, m_pad=m_pad, shift=float(1.0 / temperature))

    per_row = pl.pallas_call(
        kernel,
        out_shape=jax.ShapeDtypeStruct((m_pad, 1), jnp.float32),
        grid_spec=pltpu.PrefetchScalarGridSpec(
            num_scalar_prefetch=0,
            grid=(m_pad // tm,),
            in_specs=[
                pl.BlockSpec((tm, k), lambda i: (i, 0)),         # lhs row tile (bf16, /T)
                pl.BlockSpec((m_pad, k), lambda i: (0, 0)),      # rhs: whole matrix, resident
                pl.BlockSpec((tm, 1), lambda i: (i, 0)),         # labels (row view)
                pl.BlockSpec((n_chunks, cn), lambda i: (0, 0)),  # labels (column view, resident)
            ],
            # Output stays (tm, 1): lane-dense re-layout of the per-row loss is a
            # negligible win here (one small store per row tile).
            out_specs=pl.BlockSpec((tm, 1), lambda i: (i, 0)),
        ),
        compiler_params=pltpu.CompilerParams(
            dimension_semantics=("parallel",),
            # 32 MiB keeps headroom on v7x (64 MiB physical); resident bf16 RHS +
            # per-chunk (tm, cn) temporaries stay well under this for M up to ~50K.
            vmem_limit_bytes=32 * 1024 * 1024),
    )(lhs_pad, rhs_pad, lab_row, lab_col)

    return jnp.mean(per_row[:m_valid, 0])


# ---------------------------------------------------------------------------
# ContrastiveHead.forward
# ---------------------------------------------------------------------------
def contrastive_head_forward(box_features, gt_classes, params, *,
                             temperature=0.2, contrast_loss_weight=1.0,
                             len_rare=None):
    del len_rare  # unused by the reference ContrastiveHead.forward
    w1, b1, w2, b2 = params
    m = box_features.shape[0]
    tm = _row_tile(m)
    m_pad = _round_up(m, tm)
    lhs, rhs = mlp_head_supcon_operands(
        box_features, w1, b1, w2, b2, inv_t=1.0 / temperature, tm=tm, m_pad=m_pad)
    loss = supcon_loss_from_operands(
        lhs, rhs, gt_classes, m_valid=m, temperature=temperature, tm=tm)
    return {"loss_contrast": contrast_loss_weight * loss}


# ---------------------------------------------------------------------------
# Pure-JAX references (mirror the PyTorch forward)
# ---------------------------------------------------------------------------
def _head_ref(x, w1, b1, w2, b2):
    h = jnp.maximum(jnp.dot(x, w1, precision=jax.lax.Precision.HIGHEST) + b1, 0.0)
    f = jnp.dot(h, w2, precision=jax.lax.Precision.HIGHEST) + b2
    n = jnp.linalg.norm(f, axis=1, keepdims=True)
    return f / jnp.maximum(n, 1e-12)


def _supcon_ref(lhs, rhs, labels):
    """SupConLoss reference; lhs is already scaled by 1/temperature."""
    m = lhs.shape[0]
    sim = jnp.dot(lhs, rhs.T, precision=jax.lax.Precision.HIGHEST)
    sim = sim - jnp.max(sim, axis=1, keepdims=True)
    labels = labels.reshape(-1, 1)
    label_mask = (labels == labels.T).astype(jnp.float32)
    logits_mask = 1.0 - jnp.eye(m, dtype=jnp.float32)
    exp_sim = jnp.exp(sim) * logits_mask
    log_prob = sim - jnp.log(jnp.sum(exp_sim, axis=1, keepdims=True))
    per = jnp.sum(log_prob * logits_mask * label_mask, axis=1) / jnp.sum(label_mask, axis=1)
    return jnp.mean(-per)


if __name__ == "__main__":
    key = jax.random.PRNGKey(0)
    k_x, k_lab, k_w1, k_b1, k_w2, k_b2 = jax.random.split(key, 6)

    M, DIM_IN, FEAT_DIM, NUM_CLASSES = 192, 64, 128, 4
    TEMPERATURE, LOSS_WEIGHT = 0.2, 0.5

    box_features = jax.random.normal(k_x, (M, DIM_IN), dtype=jnp.float32)
    gt_classes = jax.random.randint(k_lab, (M,), 0, NUM_CLASSES, dtype=jnp.int32)

    # Deterministic stand-in for the c2_xavier_fill-initialized head weights.
    w1 = jax.random.normal(k_w1, (DIM_IN, DIM_IN), jnp.float32) / math.sqrt(DIM_IN)
    b1 = jax.random.normal(k_b1, (DIM_IN,), jnp.float32) * 0.01
    w2 = jax.random.normal(k_w2, (DIM_IN, FEAT_DIM), jnp.float32) / math.sqrt(DIM_IN)
    b2 = jax.random.normal(k_b2, (FEAT_DIM,), jnp.float32) * 0.01
    params = (w1, b1, w2, b2)

    out = contrastive_head_forward(box_features, gt_classes, params,
                                   temperature=TEMPERATURE,
                                   contrast_loss_weight=LOSS_WEIGHT)
    loss = jax.block_until_ready(out["loss_contrast"])

    # Tight check: feed the head kernel's own bf16 operands through a pure-f32
    # SupCon reference (validates the SupCon kernel math, fixed shift included).
    tm = _row_tile(M)
    m_pad = _round_up(M, tm)
    lhs_k, rhs_k = mlp_head_supcon_operands(box_features, *params,
                                            inv_t=1.0 / TEMPERATURE, tm=tm, m_pad=m_pad)
    lhs_k = jax.block_until_ready(lhs_k)
    ref_tight = LOSS_WEIGHT * _supcon_ref(lhs_k[:M].astype(jnp.float32),
                                          rhs_k[:M].astype(jnp.float32), gt_classes)

    # Loose end-to-end check vs a pure-f32 reference; tolerance covers bf16 MXU
    # operands in both the head and similarity matmuls + bf16 feature storage.
    feat_ref = _head_ref(box_features, *params)
    ref_loose = LOSS_WEIGHT * _supcon_ref(feat_ref * (1.0 / TEMPERATURE),
                                          feat_ref, gt_classes)

    assert jnp.isfinite(loss), "loss is not finite"
    assert jnp.allclose(loss, ref_tight, rtol=1e-3, atol=1e-3), (loss, ref_tight)
    assert jnp.allclose(loss, ref_loose, rtol=5e-2, atol=5e-2), (loss, ref_loose)
    print("KERNEL_OK")
</pallas_src>

<mosaic_0001>
module attributes {stable_mosaic.version = 11 : i64} {
  func.func @_head_kernel(%arg0: i32, %arg1: memref<96x64xbf16, #tpu.memory_space<vmem>>, %arg2: memref<64x64xbf16, #tpu.memory_space<vmem>>, %arg3: memref<1x64xf32, #tpu.memory_space<vmem>>, %arg4: memref<64x128xbf16, #tpu.memory_space<vmem>>, %arg5: memref<1x128xf32, #tpu.memory_space<vmem>>, %arg6: memref<96x128xbf16, #tpu.memory_space<vmem>>, %arg7: memref<96x128xbf16, #tpu.memory_space<vmem>>) attributes {dimension_semantics = [#tpu.dimension_semantics<parallel>], iteration_bounds = array<i64: 2>, scalar_prefetch = 0 : i64, scratch_operands = 0 : i64, tpu.core_type = #tpu.core_type<tc>, window_params = [{transform_indices = @transform_0, window_bounds = array<i64: 96, 64>}, {pipeline_mode = #tpu.pipeline_mode<synchronous>, transform_indices = @transform_1, window_bounds = array<i64: 64, 64>}, {pipeline_mode = #tpu.pipeline_mode<synchronous>, transform_indices = @transform_2, window_bounds = array<i64: 1, 64>}, {pipeline_mode = #tpu.pipeline_mode<synchronous>, transform_indices = @transform_3, window_bounds = array<i64: 64, 128>}, {pipeline_mode = #tpu.pipeline_mode<synchronous>, transform_indices = @transform_4, window_bounds = array<i64: 1, 128>}, {transform_indices = @transform_5, window_bounds = array<i64: 96, 128>}, {transform_indices = @transform_6, window_bounds = array<i64: 96, 128>}]} {
    %c0 = arith.constant 0 : index
    %c0_0 = arith.constant 0 : index
    %0 = vector.load %arg1[%c0, %c0_0] : memref<96x64xbf16, #tpu.memory_space<vmem>>, vector<96x64xbf16>
    %c0_1 = arith.constant 0 : index
    %c0_2 = arith.constant 0 : index
    %1 = vector.load %arg2[%c0_1, %c0_2] : memref<64x64xbf16, #tpu.memory_space<vmem>>, vector<64x64xbf16>
    %cst = arith.constant dense<0.000000e+00> : vector<96x64xf32>
    %2 = tpu.matmul %0, %1, %cst {dimension_numbers = #tpu.dot_dimension_numbers<[1], [0], [0], [1], [0, 0, 1, 1], [], []>} : vector<96x64xbf16>, vector<64x64xbf16>, vector<96x64xf32> -> vector<96x64xf32>
    %c0_3 = arith.constant 0 : index
    %c0_4 = arith.constant 0 : index
    %3 = vector.load %arg3[%c0_3, %c0_4] : memref<1x64xf32, #tpu.memory_space<vmem>>, vector<1x64xf32>
    %4 = vector.broadcast %3 : vector<1x64xf32> to vector<96x64xf32>
    %5 = arith.addf %2, %4 : vector<96x64xf32>
    %cst_5 = arith.constant 0.000000e+00 : f32
    %6 = vector.broadcast %cst_5 : f32 to vector<96x64xf32>
    %7 = arith.maximumf %5, %6 : vector<96x64xf32>
    %8 = arith.truncf %7 : vector<96x64xf32> to vector<96x64xbf16>
    %c0_6 = arith.constant 0 : index
    %c0_7 = arith.constant 0 : index
    %9 = vector.load %arg4[%c0_6, %c0_7] : memref<64x128xbf16, #tpu.memory_space<vmem>>, vector<64x128xbf16>
    %cst_8 = arith.constant dense<0.000000e+00> : vector<96x128xf32>
    %10 = tpu.matmul %8, %9, %cst_8 {dimension_numbers = #tpu.dot_dimension_numbers<[1], [0], [0], [1], [0, 0, 1, 1], [], []>} : vector<96x64xbf16>, vector<64x128xbf16>, vector<96x128xf32> -> vector<96x128xf32>
    %c0_9 = arith.constant 0 : index
    %c0_10 = arith.constant 0 : index
    %11 = vector.load %arg5[%c0_9, %c0_10] : memref<1x128xf32, #tpu.memory_space<vmem>>, vector<1x128xf32>
    %12 = vector.broadcast %11 : vector<1x128xf32> to vector<96x128xf32>
    %13 = arith.addf %10, %12 : vector<96x128xf32>
    %14 = arith.mulf %13, %13 : vector<96x128xf32>
    %cst_11 = arith.constant dense<0.000000e+00> : vector<96xf32>
    %15 = vector.multi_reduction <add>, %14, %cst_11 [1] : vector<96x128xf32> to vector<96xf32>
    %16 = vector.shape_cast %15 : vector<96xf32> to vector<96x1xf32>
    %cst_12 = arith.constant 1.000000e-24 : f32
    %17 = vector.broadcast %cst_12 : f32 to vector<96x1xf32>
    %18 = arith.maximumf %16, %17 : vector<96x1xf32>
    %19 = math.rsqrt %18 : vector<96x1xf32>
    %20 = vector.broadcast %19 : vector<96x1xf32> to vector<96x128xf32>
    %21 = arith.mulf %13, %20 : vector<96x128xf32>
    %22 = arith.truncf %21 : vector<96x128xf32> to vector<96x128xbf16>
    %c0_13 = arith.constant 0 : index
    %c0_14 = arith.constant 0 : index
    %23 = vector.load %arg6[%c0_13, %c0_14] : memref<96x128xbf16, #tpu.memory_space<vmem>>, vector<96x128xbf16>
    tpu.vector_store %arg6[%c0_13, %c0_14], %22 {strides = array<i32>} : memref<96x128xbf16, #tpu.memory_space<vmem>>, vector<96x128xbf16>,
    %cst_15 = arith.constant 5.000000e+00 : f32
    %24 = vector.broadcast %cst_15 : f32 to vector<96x128xf32>
    %25 = arith.mulf %21, %24 : vector<96x128xf32>
    %26 = arith.truncf %25 : vector<96x128xf32> to vector<96x128xbf16>
    %c0_16 = arith.constant 0 : index
    %c0_17 = arith.constant 0 : index
    %27 = vector.load %arg7[%c0_16, %c0_17] : memref<96x128xbf16, #tpu.memory_space<vmem>>, vector<96x128xbf16>
    tpu.vector_store %arg7[%c0_16, %c0_17], %26 {strides = array<i32>} : memref<96x128xbf16, #tpu.memory_space<vmem>>, vector<96x128xbf16>,
    return
  }
  func.func @transform_0(%arg0: i32) -> (i32, i32) {
    %c0_i32 = arith.constant 0 : i32
    %c0_i32_0 = arith.constant 0 : i32
    return %arg0, %c0_i32 : i32, i32
  }
  func.func @transform_1(%arg0: i32) -> (i32, i32) {
    %c0_i32 = arith.constant 0 : i32
    %c0_i32_0 = arith.constant 0 : i32
    %c0_i32_1 = arith.constant 0 : i32
    return %c0_i32, %c0_i32_0 : i32, i32
  }
  func.func @transform_2(%arg0: i32) -> (i32, i32) {
    %c0_i32 = arith.constant 0 : i32
    %c0_i32_0 = arith.constant 0 : i32
    %c0_i32_1 = arith.constant 0 : i32
    return %c0_i32, %c0_i32_0 : i32, i32
  }
  func.func @transform_3(%arg0: i32) -> (i32, i32) {
    %c0_i32 = arith.constant 0 : i32
    %c0_i32_0 = arith.constant 0 : i32
    %c0_i32_1 = arith.constant 0 : i32
    return %c0_i32, %c0_i32_0 : i32, i32
  }
  func.func @transform_4(%arg0: i32) -> (i32, i32) {
    %c0_i32 = arith.constant 0 : i32
    %c0_i32_0 = arith.constant 0 : i32
    %c0_i32_1 = arith.constant 0 : i32
    return %c0_i32, %c0_i32_0 : i32, i32
  }
  func.func @transform_5(%arg0: i32) -> (i32, i32) {
    %c0_i32 = arith.constant 0 : i32
    %c0_i32_0 = arith.constant 0 : i32
    return %arg0, %c0_i32 : i32, i32
  }
  func.func @transform_6(%arg0: i32) -> (i32, i32) {
    %c0_i32 = arith.constant 0 : i32
    %c0_i32_0 = arith.constant 0 : i32
    return %arg0, %c0_i32 : i32, i32
  }
}

</mosaic_0001>

<llo_original>
// kernel: tpu_custom_call.1
$region0: #{tpu_custom_call.1}
  #allocation0 [shape = 'u32[]', space=smem, size = 0x4, offset = 0x4, fixed_abs, tag = 'smem constant byte address 0x4 - core index']
  #allocation1 [shape = 'u32[72,128]{1,0:T(1,128)}', space=vmem, size = 0x9000, scoped, tag = 'internal scratch']
  %s0 = inlined_call_operand.vmem [shape: bf16[192,64], index: 0, kind: input, shape index: {}]
  %s1 = inlined_call_operand.vmem [shape: bf16[64,64], index: 1, kind: input, shape index: {}]
  %s2 = inlined_call_operand.vmem [shape: f32[1,64], index: 2, kind: input, shape index: {}]
  %s3 = inlined_call_operand.vmem [shape: bf16[64,128], index: 3, kind: input, shape index: {}]
  %s4 = inlined_call_operand.vmem [shape: f32[1,128], index: 4, kind: input, shape index: {}]
  %s5 = inlined_call_operand.hbm [shape: bf16[192,128], index: 5, kind: output, shape index: {0}]
  %s6 = inlined_call_operand.hbm [shape: bf16[192,128], index: 6, kind: output, shape index: {1}]
  %7 = xla_tuple %s5, %s6
  %s8 = sld [smem:[#allocation0]]
  $region61: #{tpu_custom_call.1} parent=0
    _
  %s10 = ssub.s32 1, %s8
  %s11 = scalar_select 0, %s10, %s8
  $region1: #{tpu_custom_call.1} parent=0
    #allocation2 [shape = 'u8[49152]{0}', space=vmem, size = 0xc000, scoped, tag = 'output window, operand 0']
    #allocation3 [shape = 's32[2]{0}', space=sflag, size = 0x8, scoped, tag = 'scoped memory for tpu_custom_call.1']
    #allocation4 [shape = 'u8[49152]{0}', space=vmem, size = 0xc000, scoped, tag = 'output window, operand 1']
    #allocation5 [shape = 's32[2]{0}', space=sflag, size = 0x8, scoped, tag = 'scoped memory for tpu_custom_call.1']
    %12 = vsyncpa [#allocation3], 0
    %s13 = scalar_lea.sflag [#allocation3], 1
    %14 = vsyncpa %s13, 0
    %15 = vsyncpa [#allocation5], 0
    %s16 = scalar_lea.sflag [#allocation5], 1
    %17 = vsyncpa %s16, 0
    loop: start=0, step=1, limit=4
    $region2: #{tpu_custom_call.1} parent=1 // loop_pre_header
      _
    $region3: #{tpu_custom_call.1} parent=1 // loop_header
      %s19 = sphi 0, %s23
      %p20 = scmp.ge.s32.totalorder %s19, 4
      %s29 = sphi 0, %s31
      %s32 = sphi 0, %s29
      %s33 = sphi 0, %s32
      %s49 = sphi 0, %s33
      %s53 = sphi 0, %s53
      %s55 = sphi 0, %s53
      %s56 = sphi 0, %s55
      %s70 = sphi 0, %s56
      %s74 = sphi 0, %s74
      %s76 = sphi 0, %s74
      %s77 = sphi 0, %s76
      %s91 = sphi 0, %s77
      %s95 = sphi 0, %s95
      %s97 = sphi 0, %s95
      %s98 = sphi 0, %s97
      %s112 = sphi 0, %s98
      %s116 = sphi 0, %s116
      %s118 = sphi 0, %s116
      %s119 = sphi 0, %s118
      %s133 = sphi 0, %s119
      %s139 = sphi 0, %s141
      %s142 = sphi 0, %s139
      %s143 = sphi 0, %s142
      %s159 = sphi 0, %s143
      %s165 = sphi 0, %s167
      %s168 = sphi 0, %s165
      %s169 = sphi 0, %s168
      %s185 = sphi 0, %s169
    $region4: #{tpu_custom_call.1} parent=1 // loop_header_branch
      %22 = sbr.rel (%p20) target = $region8
    $region5: #{tpu_custom_call.1} parent=1 // loop_body
      %s24 = ssub.s32 %s19, 1
      %s25 = ssub.s32 %s19, 2
      %s26 = sadd.s32 %s19, 1
      %s27 = ssub.s32 %s19, %s26
      %p28 = scmp.eq.s32.totalorder %s27, 0
      %s30 = sadd.s32 %s29, 1
      %s31 = scalar_select %p28, %s29, %s30
      %p34 = pneg %p28
      %p35 = scmp.eq.s32.totalorder %s19, 1
      %p36 = por %p34, %p35
      %p37 = scmp.ne.s32.totalorder %s29, %s32
      %p38 = scmp.eq.s32.totalorder %s19, 0
      %p39 = por %p37, %p38
      %p40 = scmp.ne.s32.totalorder %s29, %s32
      %p41 = scmp.eq.s32.totalorder %s24, 1
      %p42 = por %p40, %p41
      %p43 = scmp.ne.s32.totalorder %s32, %s33
      %p44 = scmp.eq.s32.totalorder %s24, 0
      %p45 = por %p43, %p44
      %p46 = scmp.ne.s32.totalorder %s32, %s33
      %p47 = scmp.eq.s32.totalorder %s25, 1
      %p48 = por %p46, %p47
      %p50 = scmp.ne.s32.totalorder %s33, %s49
      %p51 = scmp.eq.s32.totalorder %s25, 0
      %p52 = por %p50, %p51
      %s54 = sadd.s32 %s53, 1
      %p57 = scmp.eq.s32.totalorder %s19, 1
      %p58 = scmp.ne.s32.totalorder %s53, %s55
      %p59 = scmp.eq.s32.totalorder %s19, 0
      %p60 = por %p58, %p59
      %p61 = scmp.ne.s32.totalorder %s53, %s55
      %p62 = scmp.eq.s32.totalorder %s24, 1
      %p63 = por %p61, %p62
      %p64 = scmp.ne.s32.totalorder %s55, %s56
      %p65 = scmp.eq.s32.totalorder %s24, 0
      %p66 = por %p64, %p65
      %p67 = scmp.ne.s32.totalorder %s55, %s56
      %p68 = scmp.eq.s32.totalorder %s25, 1
      %p69 = por %p67, %p68
      %p71 = scmp.ne.s32.totalorder %s56, %s70
      %p72 = scmp.eq.s32.totalorder %s25, 0
      %p73 = por %p71, %p72
      %s75 = sadd.s32 %s74, 1
      %p78 = scmp.eq.s32.totalorder %s19, 1
      %p79 = scmp.ne.s32.totalorder %s74, %s76
      %p80 = scmp.eq.s32.totalorder %s19, 0
      %p81 = por %p79, %p80
      %p82 = scmp.ne.s32.totalorder %s74, %s76
      %p83 = scmp.eq.s32.totalorder %s24, 1
      %p84 = por %p82, %p83
      %p85 = scmp.ne.s32.totalorder %s76, %s77
      %p86 = scmp.eq.s32.totalorder %s24, 0
      %p87 = por %p85, %p86
      %p88 = scmp.ne.s32.totalorder %s76, %s77
      %p89 = scmp.eq.s32.totalorder %s25, 1
      %p90 = por %p88, %p89
      %p92 = scmp.ne.s32.totalorder %s77, %s91
      %p93 = scmp.eq.s32.totalorder %s25, 0
      %p94 = por %p92, %p93
      %s96 = sadd.s32 %s95, 1
      %p99 = scmp.eq.s32.totalorder %s19, 1
      %p100 = scmp.ne.s32.totalorder %s95, %s97
      %p101 = scmp.eq.s32.totalorder %s19, 0
      %p102 = por %p100, %p101
      %p103 = scmp.ne.s32.totalorder %s95, %s97
      %p104 = scmp.eq.s32.totalorder %s24, 1
      %p105 = por %p103, %p104
      %p106 = scmp.ne.s32.totalorder %s97, %s98
      %p107 = scmp.eq.s32.totalorder %s24, 0
      %p108 = por %p106, %p107
      %p109 = scmp.ne.s32.totalorder %s97, %s98
      %p110 = scmp.eq.s32.totalorder %s25, 1
      %p111 = por %p109, %p110
      %p113 = scmp.ne.s32.totalorder %s98, %s112
      %p114 = scmp.eq.s32.totalorder %s25, 0
      %p115 = por %p113, %p114
      %s117 = sadd.s32 %s116, 1
      %p120 = scmp.eq.s32.totalorder %s19, 1
      %p121 = scmp.ne.s32.totalorder %s116, %s118
      %p122 = scmp.eq.s32.totalorder %s19, 0
      %p123 = por %p121, %p122
      %p124 = scmp.ne.s32.totalorder %s116, %s118
      %p125 = scmp.eq.s32.totalorder %s24, 1
      %p126 = por %p124, %p125
      %p127 = scmp.ne.s32.totalorder %s118, %s119
      %p128 = scmp.eq.s32.totalorder %s24, 0
      %p129 = por %p127, %p128
      %p130 = scmp.ne.s32.totalorder %s118, %s119
      %p131 = scmp.eq.s32.totalorder %s25, 1
      %p132 = por %p130, %p131
      %p134 = scmp.ne.s32.totalorder %s119, %s133
      %p135 = scmp.eq.s32.totalorder %s25, 0
      %p136 = por %p134, %p135
      %s137 = ssub.s32 %s19, %s26
      %p138 = scmp.eq.s32.totalorder %s137, 0
      %s140 = sadd.s32 %s139, 1
      %s141 = scalar_select %p138, %s139, %s140
      %p144 = pneg %p138
      %p145 = scmp.eq.s32.totalorder %s19, 1
      %p146 = por %p144, %p145
      %p147 = scmp.ne.s32.totalorder %s139, %s142
      %p148 = scmp.eq.s32.totalorder %s19, 0
      %p149 = por %p147, %p148
      %p150 = scmp.ne.s32.totalorder %s139, %s142
      %p151 = scmp.eq.s32.totalorder %s24, 1
      %p152 = por %p150, %p151
      %p153 = scmp.ne.s32.totalorder %s142, %s143
      %p154 = scmp.eq.s32.totalorder %s24, 0
      %p155 = por %p153, %p154
      %p156 = scmp.ne.s32.totalorder %s142, %s143
      %p157 = scmp.eq.s32.totalorder %s25, 1
      %p158 = por %p156, %p157
      %p160 = scmp.ne.s32.totalorder %s143, %s159
      %p161 = scmp.eq.s32.totalorder %s25, 0
      %p162 = por %p160, %p161
      %s163 = ssub.s32 %s19, %s26
      %p164 = scmp.eq.s32.totalorder %s163, 0
      %s166 = sadd.s32 %s165, 1
      %s167 = scalar_select %p164, %s165, %s166
      %p170 = pneg %p164
      %p171 = scmp.eq.s32.totalorder %s19, 1
      %p172 = por %p170, %p171
      %p173 = scmp.ne.s32.totalorder %s165, %s168
      %p174 = scmp.eq.s32.totalorder %s19, 0
      %p175 = por %p173, %p174
      %p176 = scmp.ne.s32.totalorder %s165, %s168
      %p177 = scmp.eq.s32.totalorder %s24, 1
      %p178 = por %p176, %p177
      %p179 = scmp.ne.s32.totalorder %s168, %s169
      %p180 = scmp.eq.s32.totalorder %s24, 0
      %p181 = por %p179, %p180
      %p182 = scmp.ne.s32.totalorder %s168, %s169
      %p183 = scmp.eq.s32.totalorder %s25, 1
      %p184 = por %p182, %p183
      %p186 = scmp.ne.s32.totalorder %s169, %s185
      %p187 = scmp.eq.s32.totalorder %s25, 0
      %p188 = por %p186, %p187
      %p189 = scmp.le.s32.totalorder 1, %s19
      %p190 = scmp.lt.s32.totalorder %s19, 3
      %p191 = pnand %p189, %p190
      %p192 = pneg %p191
      // Predicated region
      $region9: #{tpu_custom_call.1} parent=5 // pred_check
        _
      $region10: #{tpu_custom_call.1} parent=5 // pred_check_branch
        %194 = sbr.rel (%p191) target = $region12
      $region11: #{tpu_custom_call.1} parent=5 // pred_region
        %s195 = ssub.s32 %s19, 1
        // Predicated region
        $region13: #{tpu_custom_call.1} parent=11 // pred_check
          %p196 = pneg %p66
        $region14: #{tpu_custom_call.1} parent=11 // pred_check_branch
          %198 = sbr.rel (%p196) target = $region16
        $region15: #{tpu_custom_call.1} parent=11 // pred_region
          _
        $region16: #{tpu_custom_call.1} parent=11 // pred_fallthru
          _
        // Predicated region
        $region17: #{tpu_custom_call.1} parent=11 // pred_check
          %p199 = pneg %p87
        $region18: #{tpu_custom_call.1} parent=11 // pred_check_branch
          %201 = sbr.rel (%p199) target = $region20
        $region19: #{tpu_custom_call.1} parent=11 // pred_region
          _
        $region20: #{tpu_custom_call.1} parent=11 // pred_fallthru
          _
        // Predicated region
        $region21: #{tpu_custom_call.1} parent=11 // pred_check
          %p202 = pneg %p108
        $region22: #{tpu_custom_call.1} parent=11 // pred_check_branch
          %204 = sbr.rel (%p202) target = $region24
        $region23: #{tpu_custom_call.1} parent=11 // pred_region
          _
        $region24: #{tpu_custom_call.1} parent=11 // pred_fallthru
          _
        // Predicated region
        $region25: #{tpu_custom_call.1} parent=11 // pred_check
          %p205 = pneg %p129
        $region26: #{tpu_custom_call.1} parent=11 // pred_check_branch
          %207 = sbr.rel (%p205) target = $region28
        $region27: #{tpu_custom_call.1} parent=11 // pred_region
          _
        $region28: #{tpu_custom_call.1} parent=11 // pred_fallthru
          _
      $region12: #{tpu_custom_call.1} parent=5 // pred_fallthru
        _
      %p208 = scmp.lt.s32.totalorder %s19, 2
      // Predicated region
      $region29: #{tpu_custom_call.1} parent=5 // pred_check
        %p209 = pneg %p208
      $region30: #{tpu_custom_call.1} parent=5 // pred_check_branch
        %211 = sbr.rel (%p209) target = $region32
      $region31: #{tpu_custom_call.1} parent=5 // pred_region
        // Predicated region
        $region33: #{tpu_custom_call.1} parent=31 // pred_check
          %p212 = pneg %p39
        $region34: #{tpu_custom_call.1} parent=31 // pred_check_branch
          %214 = sbr.rel (%p212) target = $region36
        $region35: #{tpu_custom_call.1} parent=31 // pred_region
          %s215 = smul.u32 12, %s19
          %p216 = scmp.lt.s32.totalorder %s215, 23
          %s217 = scalar_select %p216, %s215, 23
          %s218 = smul.addr %s217, 4
          %s219 = scalar_lea.vmem %s0, %s218
          %s220 = smul.u32 12, %s19
        $region36: #{tpu_custom_call.1} parent=31 // pred_fallthru
          _
      $region32: #{tpu_custom_call.1} parent=5 // pred_fallthru
        _
      %p221 = scmp.le.s32.totalorder 1, %s19
      %p222 = scmp.lt.s32.totalorder %s19, 3
      %p223 = pnand %p221, %p222
      %p224 = pneg %p223
      // Predicated region
      $region37: #{tpu_custom_call.1} parent=5 // pred_check
        _
      $region38: #{tpu_custom_call.1} parent=5 // pred_check_branch
        %226 = sbr.rel (%p223) target = $region40
      $region39: #{tpu_custom_call.1} parent=5 // pred_region
        %s227 = ssub.s32 %s19, 1
        %s228 = smul.u32 12, %s24
        %p229 = scmp.lt.s32.totalorder %s228, 23
        %s230 = scalar_select %p229, %s228, 23
        %s231 = smul.addr %s230, 4
        %s232 = scalar_lea.vmem %s0, %s231
        %p233 = pneg %p45
        %p234 = pneg %p42
        %p235 = pneg %p66
        %p236 = pneg %p63
        %p237 = pneg %p87
        %p238 = pneg %p84
        %p239 = pneg %p108
        %p240 = pneg %p105
        %p241 = pneg %p129
        %p242 = pneg %p126
        %p243 = pneg %p155
        %p244 = pneg %p152
        %s245 = sand.u32 %s142, 1
        %s246 = scalar_lea.sflag [#allocation3], %s245
        %s247 = sand.u32 %s142, 1
        %s248 = smul.addr %s247, 48
        %s249 = scalar_lea.vmem [#allocation2], %s248
        %p250 = pneg %p181
        %p251 = pneg %p178
        %s252 = sand.u32 %s168, 1
        %s253 = scalar_lea.sflag [#allocation5], %s252
        %s254 = sand.u32 %s168, 1
        %s255 = smul.addr %s254, 48
        %s256 = scalar_lea.vmem [#allocation4], %s255
        %s257 = smul.u32 12, %s24
        %p258 = scmp.lt.s32.totalorder %s257, 23
        %s259 = scalar_select %p258, %s257, 23
        %s260 = smul.addr %s259, 4
        %s261 = scalar_lea.vmem %s0, %s260
        %s262 = smul.u32 12, %s24
        %s263 = smul.u32 12, %s24
        %s264 = smul.u32 12, %s24
        %v266 = vld [vmem:[%s261] sm:$0xf]
        %v267 = vld [vmem:[%s261 + $0x4] sm:$0xf]
        %v268 = vld [vmem:[%s261 + $0x8] sm:$0xf]
        %v269 = vld [vmem:[%s261 + $0xc] sm:$0xf]
        %v270 = vld [vmem:[%s261 + $0x10] sm:$0xf]
        %v271 = vld [vmem:[%s261 + $0x14] sm:$0xf]
        %v272 = vld [vmem:[%s261 + $0x18] sm:$0xf]
        %v273 = vld [vmem:[%s261 + $0x1c] sm:$0xf]
        %v274 = vld [vmem:[%s261 + $0x20] sm:$0xf]
        %v275 = vld [vmem:[%s261 + $0x24] sm:$0xf]
        %v276 = vld [vmem:[%s261 + $0x28] sm:$0xf]
        %v277 = vld [vmem:[%s261 + $0x2c] sm:$0xf]
        %v278 = vld [vmem:[%s1] sm:$0xf]
        %v279 = vld [vmem:[%s1 + $0x4] sm:$0xf]
        %v280 = vld [vmem:[%s1 + $0x8] sm:$0xf]
        %v281 = vld [vmem:[%s1 + $0xc] sm:$0xf]
        %v282 = vld [vmem:[%s1 + $0x10] sm:$0xf]
        %v283 = vld [vmem:[%s1 + $0x14] sm:$0xf]
        %v284 = vld [vmem:[%s1 + $0x18] sm:$0xf]
        %v285 = vld [vmem:[%s1 + $0x1c] sm:$0xf]
        %v286 = vld [vmem:[%s2] sm:$0x1]
        %v288 = vperm.slane %v286, 0
        %v302 = vunpack.c.l.b16 %v266
        %v303 = vunpack.c.l.b16 %v267
        %v304 = vunpack.c.l.b16 %v268
        %v305 = vunpack.c.l.b16 %v269
        %v306 = vunpack.c.l.b16 %v270
        %v307 = vunpack.c.l.b16 %v271
        %v308 = vunpack.c.l.b16 %v272
        %v309 = vunpack.c.l.b16 %v273
        %v310 = vunpack.c.l.b16 %v274
        %v311 = vunpack.c.l.b16 %v275
        %v312 = vunpack.c.l.b16 %v276
        %v313 = vunpack.c.l.b16 %v277
        %v314 = vpack.c.b16 %v303, %v302
        %v315 = vpack.c.b16 %v305, %v304
        %v316 = vpack.c.b16 %v307, %v306
        %v317 = vpack.c.b16 %v309, %v308
        %v318 = vpack.c.b16 %v311, %v310
        %v319 = vpack.c.b16 %v313, %v312
        %v328 = vunpack.c.l.b16 %v278
        %v329 = vunpack.c.l.b16 %v279
        %v330 = vunpack.c.l.b16 %v280
        %v331 = vunpack.c.l.b16 %v281
        %v332 = vunpack.c.l.b16 %v282
        %v333 = vunpack.c.l.b16 %v283
        %v334 = vunpack.c.l.b16 %v284
        %v335 = vunpack.c.l.b16 %v285
        %v336 = vpack.c.b16 %v329, %v328
        %v337 = vpack.c.b16 %v331, %v330
        %v338 = vpack.c.b16 %v333, %v332
        %v339 = vpack.c.b16 %v335, %v334
        %vm344 = vcmask 523264
        %v346 = vsel %vm344, %v314, 0
        %v349 = vsel %vm344, %v315, 0
        %v352 = vsel %vm344, %v316, 0
        %v355 = vsel %vm344, %v317, 0
        %v358 = vsel %vm344, %v318, 0
        %v361 = vsel %vm344, %v319, 0
        %363 = vmatpush.bf16.msra.mxu0 0
        %364 = vmatpush.bf16.msra.mxu0 0
        %365 = vmatpush.bf16.msra.mxu0 0
        %366 = vmatpush.bf16.msra.mxu0 0
        %367 = vmatpush.bf16.msra.mxu0 %v339
        %368 = vmatpush.bf16.msra.mxu0 %v338
        %369 = vmatpush.bf16.msra.mxu0 %v337
        %370 = vmatpush.bf16.msra.mxu0 %v336
        %371 = vmatmul.bf16.gmra.mxu0 %v346
        %v372 = vpop.f32.mrf.mxu0
        %v373 = vadd.f32 %v288, %v372
        %v374 = vpop.f32.mrf.mxu0
        %v375 = vadd.f32 %v288, %v374
        %376 = vmatmul.bf16.gmra.mxu0 %v349
        %v377 = vpop.f32.mrf.mxu0
        %v378 = vadd.f32 %v288, %v377
        %v379 = vpop.f32.mrf.mxu0
        %v380 = vadd.f32 %v288, %v379
        %381 = vmatmul.bf16.gmra.mxu0 %v352
        %v382 = vpop.f32.mrf.mxu0
        %v383 = vadd.f32 %v288, %v382
        %v384 = vpop.f32.mrf.mxu0
        %v385 = vadd.f32 %v288, %v384
        %386 = vmatmul.bf16.gmra.mxu0 %v355
        %v387 = vpop.f32.mrf.mxu0
        %v388 = vadd.f32 %v288, %v387
        %v389 = vpop.f32.mrf.mxu0
        %v390 = vadd.f32 %v288, %v389
        %391 = vmatmul.bf16.gmra.mxu0 %v358
        %v392 = vpop.f32.mrf.mxu0
        %v393 = vadd.f32 %v288, %v392
        %v394 = vpop.f32.mrf.mxu0
        %v395 = vadd.f32 %v288, %v394
        %396 = vmatmul.bf16.gmra.mxu0 %v361
        %v397 = vpop.f32.mrf.mxu0
        %v398 = vadd.f32 %v288, %v397
        %v399 = vpop.f32.mrf.mxu0
        %v400 = vadd.f32 %v288, %v399
        %401 = vdwg.mxu0
        %v402 = vmax.f32 %v373, 0.0
        %v403 = vmax.f32 %v375, 0.0
        %v404 = vmax.f32 %v378, 0.0
        %v405 = vmax.f32 %v380, 0.0
        %v406 = vmax.f32 %v383, 0.0
        %v407 = vmax.f32 %v385, 0.0
        %v408 = vmax.f32 %v388, 0.0
        %v409 = vmax.f32 %v390, 0.0
        %v410 = vmax.f32 %v393, 0.0
        %v411 = vmax.f32 %v395, 0.0
        %v412 = vmax.f32 %v398, 0.0
        %v413 = vmax.f32 %v400, 0.0
        %v414 = vpack.c.bf16 %v403, %v402
        %v415 = vpack.c.bf16 %v405, %v404
        %v416 = vpack.c.bf16 %v407, %v406
        %v417 = vpack.c.bf16 %v409, %v408
        %v418 = vpack.c.bf16 %v411, %v410
        %v419 = vpack.c.bf16 %v413, %v412
        %v420 = vld [vmem:[%s3] sm:$0xf]
        %v421 = vld [vmem:[%s3 + $0x4] sm:$0xf]
        %v422 = vld [vmem:[%s3 + $0x8] sm:$0xf]
        %v423 = vld [vmem:[%s3 + $0xc] sm:$0xf]
        %v424 = vld [vmem:[%s3 + $0x10] sm:$0xf]
        %v425 = vld [vmem:[%s3 + $0x14] sm:$0xf]
        %v426 = vld [vmem:[%s3 + $0x18] sm:$0xf]
        %v427 = vld [vmem:[%s3 + $0x1c] sm:$0xf]
        %v428 = vld [vmem:[%s4] sm:$0x1]
        %v430 = vperm.slane %v428, 0
        %v440 = vunpack.c.l.b16 %v420
        %v441 = vunpack.c.l.b16 %v421
        %v442 = vunpack.c.l.b16 %v422
        %v443 = vunpack.c.l.b16 %v423
        %v444 = vunpack.c.l.b16 %v424
        %v445 = vunpack.c.l.b16 %v425
        %v446 = vunpack.c.l.b16 %v426
        %v447 = vunpack.c.l.b16 %v427
        %v448 = vpack.c.b16 %v441, %v440
        %v449 = vpack.c.b16 %v443, %v442
        %v450 = vpack.c.b16 %v445, %v444
        %v451 = vpack.c.b16 %v447, %v446
        %v457 = vsel %vm344, %v414, 0
        %v460 = vsel %vm344, %v415, 0
        %v463 = vsel %vm344, %v416, 0
        %v466 = vsel %vm344, %v417, 0
        %v469 = vsel %vm344, %v418, 0
        %v472 = vsel %vm344, %v419, 0
        %474 = vmatpush.bf16.msra.mxu0 0
        %475 = vmatpush.bf16.msra.mxu0 0
        %476 = vmatpush.bf16.msra.mxu0 0
        %477 = vmatpush.bf16.msra.mxu0 0
        %478 = vmatpush.bf16.msra.mxu0 %v451
        %479 = vmatpush.bf16.msra.mxu0 %v450
        %480 = vmatpush.bf16.msra.mxu0 %v449
        %481 = vmatpush.bf16.msra.mxu0 %v448
        %482 = vmatmul.bf16.gmra.mxu0 %v457
        %v483 = vpop.f32.mrf.mxu0
        %v484 = vadd.f32 %v430, %v483
        %v485 = vpop.f32.mrf.mxu0
        %v486 = vadd.f32 %v430, %v485
        %487 = vmatmul.bf16.gmra.mxu0 %v460
        %v488 = vpop.f32.mrf.mxu0
        %v489 = vadd.f32 %v430, %v488
        %v490 = vpop.f32.mrf.mxu0
        %v491 = vadd.f32 %v430, %v490
        %492 = vmatmul.bf16.gmra.mxu0 %v463
        %v493 = vpop.f32.mrf.mxu0
        %v494 = vadd.f32 %v430, %v493
        %v495 = vpop.f32.mrf.mxu0
        %v496 = vadd.f32 %v430, %v495
        %497 = vmatmul.bf16.gmra.mxu0 %v466
        %v498 = vpop.f32.mrf.mxu0
        %v499 = vadd.f32 %v430, %v498
        %v500 = vpop.f32.mrf.mxu0
        %v501 = vadd.f32 %v430, %v500
        %502 = vmatmul.bf16.gmra.mxu0 %v469
        %v503 = vpop.f32.mrf.mxu0
        %v504 = vadd.f32 %v430, %v503
        %v505 = vpop.f32.mrf.mxu0
        %v506 = vadd.f32 %v430, %v505
        %507 = vmatmul.bf16.gmra.mxu0 %v472
        %v508 = vpop.f32.mrf.mxu0
        %v509 = vadd.f32 %v430, %v508
        %v510 = vpop.f32.mrf.mxu0
        %v511 = vadd.f32 %v430, %v510
        %512 = vdwg.mxu0
        %v513 = vmul.f32 %v484, %v484
        %v514 = vmul.f32 %v486, %v486
        %v515 = vmul.f32 %v489, %v489
        %v516 = vmul.f32 %v491, %v491
        %v517 = vmul.f32 %v494, %v494
        %v518 = vmul.f32 %v496, %v496
        %v519 = vmul.f32 %v499, %v499
        %v520 = vmul.f32 %v501, %v501
        %v521 = vmul.f32 %v504, %v504
        %v522 = vmul.f32 %v506, %v506
        %v523 = vmul.f32 %v509, %v509
        %v524 = vmul.f32 %v511, %v511
        %525 = vadd.xlane.f32.xlu0 %v513
        %v526 = vpop.xlane.xlu0 %525
        %527 = vadd.xlane.f32.xlu0 %v514
        %v528 = vpop.xlane.xlu0 %527
        %529 = vadd.xlane.f32.xlu0 %v515
        %v530 = vpop.xlane.xlu0 %529
        %531 = vadd.xlane.f32.xlu0 %v516
        %v532 = vpop.xlane.xlu0 %531
        %533 = vadd.xlane.f32.xlu0 %v517
        %v534 = vpop.xlane.xlu0 %533
        %535 = vadd.xlane.f32.xlu0 %v518
        %v536 = vpop.xlane.xlu0 %535
        %537 = vadd.xlane.f32.xlu0 %v519
        %v538 = vpop.xlane.xlu0 %537
        %539 = vadd.xlane.f32.xlu0 %v520
        %v540 = vpop.xlane.xlu0 %539
        %541 = vadd.xlane.f32.xlu0 %v521
        %v542 = vpop.xlane.xlu0 %541
        %543 = vadd.xlane.f32.xlu0 %v522
        %v544 = vpop.xlane.xlu0 %543
        %545 = vadd.xlane.f32.xlu0 %v523
        %v546 = vpop.xlane.xlu0 %545
        %547 = vadd.xlane.f32.xlu0 %v524
        %v548 = vpop.xlane.xlu0 %547
        %v549 = vmax.f32 %v526, 1e-24
        %v550 = vmax.f32 %v528, 1e-24
        %v551 = vmax.f32 %v530, 1e-24
        %v552 = vmax.f32 %v532, 1e-24
        %v553 = vmax.f32 %v534, 1e-24
        %v554 = vmax.f32 %v536, 1e-24
        %v555 = vmax.f32 %v538, 1e-24
        %v556 = vmax.f32 %v540, 1e-24
        %v557 = vmax.f32 %v542, 1e-24
        %v558 = vmax.f32 %v544, 1e-24
        %v559 = vmax.f32 %v546, 1e-24
        %v560 = vmax.f32 %v548, 1e-24
        %v561 = vrsqrt.pop %v549
        %v562 = vmul.f32 %v561, %v549
        %v563 = vmul.f32 %v562, %v561
        %v564 = vmul.f32 0.5, %v563
        %v565 = vsub.f32 1.5, %v564
        %v566 = vmul.f32 %v561, %v565
        %vm567 = vweird.f32 %v549
        %vm568 = vweird.f32 %v561
        %vm569 = vmor %vm567, %vm568
        %v570 = vsel %vm569, %v561, %v566
        %v571 = vrsqrt.pop %v550
        %v572 = vmul.f32 %v571, %v550
        %v573 = vmul.f32 %v572, %v571
        %v574 = vmul.f32 0.5, %v573
        %v575 = vsub.f32 1.5, %v574
        %v576 = vmul.f32 %v571, %v575
        %vm577 = vweird.f32 %v550
        %vm578 = vweird.f32 %v571
        %vm579 = vmor %vm577, %vm578
        %v580 = vsel %vm579, %v571, %v576
        %v581 = vrsqrt.pop %v551
        %v582 = vmul.f32 %v581, %v551
        %v583 = vmul.f32 %v582, %v581
        %v584 = vmul.f32 0.5, %v583
        %v585 = vsub.f32 1.5, %v584
        %v586 = vmul.f32 %v581, %v585
        %vm587 = vweird.f32 %v551
        %vm588 = vweird.f32 %v581
        %vm589 = vmor %vm587, %vm588
        %v590 = vsel %vm589, %v581, %v586
        %v591 = vrsqrt.pop %v552
        %v592 = vmul.f32 %v591, %v552
        %v593 = vmul.f32 %v592, %v591
        %v594 = vmul.f32 0.5, %v593
        %v595 = vsub.f32 1.5, %v594
        %v596 = vmul.f32 %v591, %v595
        %vm597 = vweird.f32 %v552
        %vm598 = vweird.f32 %v591
        %vm599 = vmor %vm597, %vm598
        %v600 = vsel %vm599, %v591, %v596
        %v601 = vrsqrt.pop %v553
        %v602 = vmul.f32 %v601, %v553
        %v603 = vmul.f32 %v602, %v601
        %v604 = vmul.f32 0.5, %v603
        %v605 = vsub.f32 1.5, %v604
        %v606 = vmul.f32 %v601, %v605
        %vm607 = vweird.f32 %v553
        %vm608 = vweird.f32 %v601
        %vm609 = vmor %vm607, %vm608
        %v610 = vsel %vm609, %v601, %v606
        %v611 = vrsqrt.pop %v554
        %v612 = vmul.f32 %v611, %v554
        %v613 = vmul.f32 %v612, %v611
        %v614 = vmul.f32 0.5, %v613
        %v615 = vsub.f32 1.5, %v614
        %v616 = vmul.f32 %v611, %v615
        %vm617 = vweird.f32 %v554
        %vm618 = vweird.f32 %v611
        %vm619 = vmor %vm617, %vm618
        %v620 = vsel %vm619, %v611, %v616
        %v621 = vrsqrt.pop %v555
        %v622 = vmul.f32 %v621, %v555
        %v623 = vmul.f32 %v622, %v621
        %v624 = vmul.f32 0.5, %v623
        %v625 = vsub.f32 1.5, %v624
        %v626 = vmul.f32 %v621, %v625
        %vm627 = vweird.f32 %v555
        %vm628 = vweird.f32 %v621
        %vm629 = vmor %vm627, %vm628
        %v630 = vsel %vm629, %v621, %v626
        %v631 = vrsqrt.pop %v556
        %v632 = vmul.f32 %v631, %v556
        %v633 = vmul.f32 %v632, %v631
        %v634 = vmul.f32 0.5, %v633
        %v635 = vsub.f32 1.5, %v634
        %v636 = vmul.f32 %v631, %v635
        %vm637 = vweird.f32 %v556
        %vm638 = vweird.f32 %v631
        %vm639 = vmor %vm637, %vm638
        %v640 = vsel %vm639, %v631, %v636
        %v641 = vrsqrt.pop %v557
        %v642 = vmul.f32 %v641, %v557
        %v643 = vmul.f32 %v642, %v641
        %v644 = vmul.f32 0.5, %v643
        %v645 = vsub.f32 1.5, %v644
        %v646 = vmul.f32 %v641, %v645
        %vm647 = vweird.f32 %v557
        %vm648 = vweird.f32 %v641
        %vm649 = vmor %vm647, %vm648
        %v650 = vsel %vm649, %v641, %v646
        %v651 = vrsqrt.pop %v558
        %v652 = vmul.f32 %v651, %v558
        %v653 = vmul.f32 %v652, %v651
        %v654 = vmul.f32 0.5, %v653
        %v655 = vsub.f32 1.5, %v654
        %v656 = vmul.f32 %v651, %v655
        %vm657 = vweird.f32 %v558
        %vm658 = vweird.f32 %v651
        %vm659 = vmor %vm657, %vm658
        %v660 = vsel %vm659, %v651, %v656
        %v661 = vrsqrt.pop %v559
        %v662 = vmul.f32 %v661, %v559
        %v663 = vmul.f32 %v662, %v661
        %v664 = vmul.f32 0.5, %v663
        %v665 = vsub.f32 1.5, %v664
        %v666 = vmul.f32 %v661, %v665
        %vm667 = vweird.f32 %v559
        %vm668 = vweird.f32 %v661
        %vm669 = vmor %vm667, %vm668
        %v670 = vsel %vm669, %v661, %v666
        %v671 = vrsqrt.pop %v560
        %v672 = vmul.f32 %v671, %v560
        %v673 = vmul.f32 %v672, %v671
        %v674 = vmul.f32 0.5, %v673
        %v675 = vsub.f32 1.5, %v674
        %v676 = vmul.f32 %v671, %v675
        %vm677 = vweird.f32 %v560
        %vm678 = vweird.f32 %v671
        %vm679 = vmor %vm677, %vm678
        %v680 = vsel %vm679, %v671, %v676
        %v681 = vmul.f32 %v484, %v570
        %v682 = vmul.f32 %v486, %v580
        %v683 = vmul.f32 %v489, %v590
        %v684 = vmul.f32 %v491, %v600
        %v685 = vmul.f32 %v494, %v610
        %v686 = vmul.f32 %v496, %v620
        %v687 = vmul.f32 %v499, %v630
        %v688 = vmul.f32 %v501, %v640
        %v689 = vmul.f32 %v504, %v650
        %v690 = vmul.f32 %v506, %v660
        %v691 = vmul.f32 %v509, %v670
        %v692 = vmul.f32 %v511, %v680
        %v693 = vpack.c.bf16 %v681, %v681
        %v694 = vpack.c.bf16 %v682, %v682
        %v695 = vpack.c.bf16 %v683, %v683
        %v696 = vpack.c.bf16 %v684, %v684
        %v697 = vpack.c.bf16 %v685, %v685
        %v698 = vpack.c.bf16 %v686, %v686
        %v699 = vpack.c.bf16 %v687, %v687
        %v700 = vpack.c.bf16 %v688, %v688
        %v701 = vpack.c.bf16 %v689, %v689
        %v702 = vpack.c.bf16 %v690, %v690
        %v703 = vpack.c.bf16 %v691, %v691
        %v704 = vpack.c.bf16 %v692, %v692
        %705 = vst [vmem:[%s249] sm:$0xf] %v693
        %706 = vst [vmem:[%s249 + $0x4] sm:$0xf] %v694
        %707 = vst [vmem:[%s249 + $0x8] sm:$0xf] %v695
        %708 = vst [vmem:[%s249 + $0xc] sm:$0xf] %v696
        %709 = vst [vmem:[%s249 + $0x10] sm:$0xf] %v697
        %710 = vst [vmem:[%s249 + $0x14] sm:$0xf] %v698
        %711 = vst [vmem:[%s249 + $0x18] sm:$0xf] %v699
        %712 = vst [vmem:[%s249 + $0x1c] sm:$0xf] %v700
        %713 = vst [vmem:[%s249 + $0x20] sm:$0xf] %v701
        %714 = vst [vmem:[%s249 + $0x24] sm:$0xf] %v702
        %715 = vst [vmem:[%s249 + $0x28] sm:$0xf] %v703
        %716 = vst [vmem:[%s249 + $0x2c] sm:$0xf] %v704
        %v717 = vmul.f32 %v681, 5.0
        %v718 = vmul.f32 %v682, 5.0
        %v719 = vmul.f32 %v683, 5.0
        %v720 = vmul.f32 %v684, 5.0
        %v721 = vmul.f32 %v685, 5.0
        %v722 = vmul.f32 %v686, 5.0
        %v723 = vmul.f32 %v687, 5.0
        %v724 = vmul.f32 %v688, 5.0
        %v725 = vmul.f32 %v689, 5.0
        %v726 = vmul.f32 %v690, 5.0
        %v727 = vmul.f32 %v691, 5.0
        %v728 = vmul.f32 %v692, 5.0
        %v729 = vpack.c.bf16 %v717, %v717
        %v730 = vpack.c.bf16 %v718, %v718
        %v731 = vpack.c.bf16 %v719, %v719
        %v732 = vpack.c.bf16 %v720, %v720
        %v733 = vpack.c.bf16 %v721, %v721
        %v734 = vpack.c.bf16 %v722, %v722
        %v735 = vpack.c.bf16 %v723, %v723
        %v736 = vpack.c.bf16 %v724, %v724
        %v737 = vpack.c.bf16 %v725, %v725
        %v738 = vpack.c.bf16 %v726, %v726
        %v739 = vpack.c.bf16 %v727, %v727
        %v740 = vpack.c.bf16 %v728, %v728
        %741 = vst [vmem:[%s256] sm:$0xf] %v729
        %742 = vst [vmem:[%s256 + $0x4] sm:$0xf] %v730
        %743 = vst [vmem:[%s256 + $0x8] sm:$0xf] %v731
        %744 = vst [vmem:[%s256 + $0xc] sm:$0xf] %v732
        %745 = vst [vmem:[%s256 + $0x10] sm:$0xf] %v733
        %746 = vst [vmem:[%s256 + $0x14] sm:$0xf] %v734
        %747 = vst [vmem:[%s256 + $0x18] sm:$0xf] %v735
        %748 = vst [vmem:[%s256 + $0x1c] sm:$0xf] %v736
        %749 = vst [vmem:[%s256 + $0x20] sm:$0xf] %v737
        %750 = vst [vmem:[%s256 + $0x24] sm:$0xf] %v738
        %751 = vst [vmem:[%s256 + $0x28] sm:$0xf] %v739
        %752 = vst [vmem:[%s256 + $0x2c] sm:$0xf] %v740
        %s753 = sand.u32 %s142, 1
        %s754 = scalar_lea.sflag [#allocation3], %s753
        %s755 = sand.u32 %s142, 1
        %s756 = smul.addr %s755, 48
        %s757 = scalar_lea.vmem [#allocation2], %s756
        %s758 = sand.u32 %s168, 1
        %s759 = scalar_lea.sflag [#allocation5], %s758
        %s760 = sand.u32 %s168, 1
        %s761 = smul.addr %s760, 48
        %s762 = scalar_lea.vmem [#allocation4], %s761
        // Predicated region
        $region41: #{tpu_custom_call.1} parent=39 // pred_check
          %p763 = pneg %p152
        $region42: #{tpu_custom_call.1} parent=39 // pred_check_branch
          %765 = sbr.rel (%p763) target = $region44
        $region43: #{tpu_custom_call.1} parent=39 // pred_region
          %s766 = smul.u32 12, %s24
          %768 = vsyncadd %s754, 0
          %s769 = smul.addr %s766, 4
          %s770 = scalar_lea.hbm %s5, %s769
          %s771 = sshll.u32 %s757, 4
          %s772 = int_to_ptr.vmem [resolvable:$true] %s771
          %s773 = sshll.u32 %s770, 4
          %s774 = int_to_ptr.hbm [resolvable:$true] %s773
          %779 = dma.vmem_to_hbm [thread:$0]  %s772, 768, %s774, %s754, 64, 64, 4
        $region44: #{tpu_custom_call.1} parent=39 // pred_fallthru
          _
        // Predicated region
        $region45: #{tpu_custom_call.1} parent=39 // pred_check
          %p780 = pneg %p178
        $region46: #{tpu_custom_call.1} parent=39 // pred_check_branch
          %782 = sbr.rel (%p780) target = $region48
        $region47: #{tpu_custom_call.1} parent=39 // pred_region
          %s783 = smul.u32 12, %s24
          %785 = vsyncadd %s759, 0
          %s786 = smul.addr %s783, 4
          %s787 = scalar_lea.hbm %s6, %s786
          %s788 = sshll.u32 %s762, 4
          %s789 = int_to_ptr.vmem [resolvable:$true] %s788
          %s790 = sshll.u32 %s787, 4
          %s791 = int_to_ptr.hbm [resolvable:$true] %s790
          %796 = dma.vmem_to_hbm [thread:$0]  %s789, 768, %s791, %s759, 64, 64, 4
        $region48: #{tpu_custom_call.1} parent=39 // pred_fallthru
          _
      $region40: #{tpu_custom_call.1} parent=5 // pred_fallthru
        _
      %p797 = scmp.le.s32.totalorder 2, %s19
      // Predicated region
      $region49: #{tpu_custom_call.1} parent=5 // pred_check
        %p798 = pneg %p797
      $region50: #{tpu_custom_call.1} parent=5 // pred_check_branch
        %800 = sbr.rel (%p798) target = $region52
      $region51: #{tpu_custom_call.1} parent=5 // pred_region
        %s801 = ssub.s32 %s19, 2
        // Predicated region
        $region53: #{tpu_custom_call.1} parent=51 // pred_check
          %p802 = pneg %p158
        $region54: #{tpu_custom_call.1} parent=51 // pred_check_branch
          %804 = sbr.rel (%p802) target = $region56
        $region55: #{tpu_custom_call.1} parent=51 // pred_region
          %s805 = sand.u32 %s143, 1
          %s806 = scalar_lea.sflag [#allocation3], %s805
          %s807 = sand.u32 %s143, 1
          %s808 = smul.addr %s807, 48
          %s809 = scalar_lea.vmem [#allocation2], %s808
          %811 = dma.done %s806, 768
        $region56: #{tpu_custom_call.1} parent=51 // pred_fallthru
          _
        // Predicated region
        $region57: #{tpu_custom_call.1} parent=51 // pred_check
          %p812 = pneg %p184
        $region58: #{tpu_custom_call.1} parent=51 // pred_check_branch
          %814 = sbr.rel (%p812) target = $region60
        $region59: #{tpu_custom_call.1} parent=51 // pred_region
          %s815 = sand.u32 %s169, 1
          %s816 = scalar_lea.sflag [#allocation5], %s815
          %s817 = sand.u32 %s169, 1
          %s818 = smul.addr %s817, 48
          %s819 = scalar_lea.vmem [#allocation4], %s818
          %821 = dma.done %s816, 768
        $region60: #{tpu_custom_call.1} parent=51 // pred_fallthru
          _
      $region52: #{tpu_custom_call.1} parent=5 // pred_fallthru
        _
    $region6: #{tpu_custom_call.1} parent=1 // loop_footer
      %s23 = sadd.s32 1, %s19
    $region7: #{tpu_custom_call.1} parent=1 // loop_footer_branch
      %18 = sbr.rel target = $region3
    $region8: #{tpu_custom_call.1} parent=1 // loop_exit
      _
    %822 = vsyncpa [#allocation3], 1
    %s823 = scalar_lea.sflag [#allocation3], 1
    %824 = vsyncpa %s823, 1
    %825 = vsyncpa [#allocation5], 1
    %s826 = scalar_lea.sflag [#allocation5], 1
    %827 = vsyncpa %s826, 1

</llo_original>
